<compile_context>
chip_gen: v7x
topology: tpu7x:2x2x1
jax: 0.10.0
libtpu: 0.0.40
codegen_flags: <defaults>
</compile_context>

<pallas_src>
import jax
import jax.numpy as jnp
from jax.experimental import pallas as pl
from jax.experimental.pallas import tpu as pltpu

# Small shapes consistent with the module (meanfc/varfc force the 16-dim trunk
# output).  B = 128 so the transposed outputs are exactly one lane-width wide.
B = 128        # batch size (lane axis inside the kernel)
IN_DIM = 32    # Encoder in_dim
H1 = 64        # fc1 output width (undefined in the module; chosen)
H2 = 16        # fc2 output width (fixed: meanfc = Linear(16, out_dim))
OUT_DIM = 8    # Encoder out_dim

_NEG_SLOPE = 0.2  # nn.LeakyReLU(0.2)


def _leaky_relu(x):
    # For slope in (0, 1): max(x, slope*x) == LeakyReLU(x).  Pure VPU.
    return jnp.maximum(x, _NEG_SLOPE * x)


def _trunk(xT_ref, w1_ref, b1_ref, w2_ref, b2_ref):
    # xT: [IN_DIM, B]   w1: [H1, IN_DIM]   b1: [H1, 1]
    # w2: [H2, H1]      b2: [H2, 1]
    h1 = jnp.dot(w1_ref[...], xT_ref[...],
                 preferred_element_type=jnp.float32) + b1_ref[...]
    h1 = _leaky_relu(h1)                                   # [H1, B]
    h2 = jnp.dot(w2_ref[...], h1,
                 preferred_element_type=jnp.float32) + b2_ref[...]
    return _leaky_relu(h2)                                 # [H2, B]


def _encoder_ae_kernel(xT_ref, w1_ref, b1_ref, w2_ref, b2_ref,
                       wm_ref, bm_ref, zT_ref):
    h2 = _trunk(xT_ref, w1_ref, b1_ref, w2_ref, b2_ref)
    z = jnp.dot(wm_ref[...], h2,
                preferred_element_type=jnp.float32) + bm_ref[...]
    zT_ref[...] = z.astype(zT_ref.dtype)                   # [OUT_DIM, B]


def _encoder_vae_kernel(xT_ref, w1_ref, b1_ref, w2_ref, b2_ref,
                        wm_ref, bm_ref, wv_ref, bv_ref,
                        meanT_ref, varT_ref):
    h2 = _trunk(xT_ref, w1_ref, b1_ref, w2_ref, b2_ref)
    mean = jnp.dot(wm_ref[...], h2,
                   preferred_element_type=jnp.float32) + bm_ref[...]
    var = jnp.dot(wv_ref[...], h2,
                  preferred_element_type=jnp.float32) + bv_ref[...]
    meanT_ref[...] = mean.astype(meanT_ref.dtype)
    varT_ref[...] = var.astype(varT_ref.dtype)


def encoder_forward(x, params, mode="ae"):
    """Equivalent of Encoder.forward(x) for the given mode.

    x: [B, in_dim] float32.  Weights follow PyTorch Linear layout [out, in];
    biases are stored as [out, 1] column vectors for the transposed compute.
    """
    assert mode in ("ae", "vae")
    xT = x.T                                   # [IN_DIM, B]: batch on lanes
    batch = x.shape[0]
    out_dim = params["wm"].shape[0]
    vmem = pl.BlockSpec(memory_space=pltpu.MemorySpace.VMEM)

    if mode == "ae":
        zT = pl.pallas_call(
            _encoder_ae_kernel,
            out_shape=jax.ShapeDtypeStruct((out_dim, batch), jnp.float32),
            in_specs=[vmem] * 7,
            out_specs=vmem,
        )(xT, params["w1"], params["b1"], params["w2"], params["b2"],
          params["wm"], params["bm"])
        return zT.T                            # [B, OUT_DIM]

    meanT, varT = pl.pallas_call(
        _encoder_vae_kernel,
        out_shape=(jax.ShapeDtypeStruct((out_dim, batch), jnp.float32),
                   jax.ShapeDtypeStruct((out_dim, batch), jnp.float32)),
        in_specs=[vmem] * 9,
        out_specs=(vmem, vmem),
    )(xT, params["w1"], params["b1"], params["w2"], params["b2"],
      params["wm"], params["bm"], params["wv"], params["bv"])
    return meanT.T, varT.T


def _reference(x, p, mode="ae"):
    def lrelu(v):
        return jnp.where(v > 0, v, _NEG_SLOPE * v)
    h1 = lrelu(x @ p["w1"].T + p["b1"].reshape(1, -1))
    h2 = lrelu(h1 @ p["w2"].T + p["b2"].reshape(1, -1))
    mean = h2 @ p["wm"].T + p["bm"].reshape(1, -1)
    if mode == "vae":
        var = h2 @ p["wv"].T + p["bv"].reshape(1, -1)
        return mean, var
    return mean


if __name__ == "__main__":
    key = jax.random.PRNGKey(0)
    ks = jax.random.split(key, 10)

    x = jax.random.normal(ks[0], (B, IN_DIM), dtype=jnp.float32)

    params = {
        # PyTorch Linear layout: weight [out, in]; bias kept as [out, 1].
        "w1": jax.random.normal(ks[1], (H1, IN_DIM), dtype=jnp.float32) * 0.1,
        "b1": jax.random.normal(ks[2], (H1, 1), dtype=jnp.float32) * 0.1,
        "w2": jax.random.normal(ks[3], (H2, H1), dtype=jnp.float32) * 0.1,
        "b2": jax.random.normal(ks[4], (H2, 1), dtype=jnp.float32) * 0.1,
        "wm": jax.random.normal(ks[5], (OUT_DIM, H2), dtype=jnp.float32) * 0.1,
        "bm": jax.random.normal(ks[6], (OUT_DIM, 1), dtype=jnp.float32) * 0.1,
        "wv": jax.random.normal(ks[7], (OUT_DIM, H2), dtype=jnp.float32) * 0.1,
        "bv": jax.random.normal(ks[8], (OUT_DIM, 1), dtype=jnp.float32) * 0.1,
    }

    # --- 'ae' mode ---
    z = encoder_forward(x, params, mode="ae")
    z = jax.block_until_ready(z)
    z_ref = _reference(x, params, mode="ae")
    assert z.shape == (B, OUT_DIM), z.shape
    assert jnp.allclose(z, z_ref, atol=1e-4, rtol=1e-4), "ae mismatch vs reference"

    # --- 'vae' mode ---
    mean, var = encoder_forward(x, params, mode="vae")
    mean = jax.block_until_ready(mean)
    var = jax.block_until_ready(var)
    mean_ref, var_ref = _reference(x, params, mode="vae")
    assert jnp.allclose(mean, mean_ref, atol=1e-4, rtol=1e-4), "vae mean mismatch"
    assert jnp.allclose(var, var_ref, atol=1e-4, rtol=1e-4), "vae var mismatch"

    print("KERNEL_OK")
</pallas_src>

<mosaic_0001>
module attributes {stable_mosaic.version = 11 : i64} {
  func.func @_encoder_ae_kernel(%arg0: memref<32x128xf32, #tpu.memory_space<vmem>>, %arg1: memref<64x32xf32, #tpu.memory_space<vmem>>, %arg2: memref<64x1xf32, #tpu.memory_space<vmem>>, %arg3: memref<16x64xf32, #tpu.memory_space<vmem>>, %arg4: memref<16x1xf32, #tpu.memory_space<vmem>>, %arg5: memref<8x16xf32, #tpu.memory_space<vmem>>, %arg6: memref<8x1xf32, #tpu.memory_space<vmem>>, %arg7: memref<8x128xf32, #tpu.memory_space<vmem>>) attributes {dimension_semantics = [], scalar_prefetch = 0 : i64, scratch_operands = 0 : i64, tpu.core_type = #tpu.core_type<tc>} {
    %c0 = arith.constant 0 : index
    %c0_0 = arith.constant 0 : index
    %0 = vector.load %arg1[%c0, %c0_0] : memref<64x32xf32, #tpu.memory_space<vmem>>, vector<64x32xf32>
    %c0_1 = arith.constant 0 : index
    %c0_2 = arith.constant 0 : index
    %1 = vector.load %arg0[%c0_1, %c0_2] : memref<32x128xf32, #tpu.memory_space<vmem>>, vector<32x128xf32>
    %cst = arith.constant dense<0.000000e+00> : vector<64x128xf32>
    %2 = tpu.matmul %0, %1, %cst {dimension_numbers = #tpu.dot_dimension_numbers<[1], [0], [0], [1], [0, 0, 1, 1], [], []>} : vector<64x32xf32>, vector<32x128xf32>, vector<64x128xf32> -> vector<64x128xf32>
    %c0_3 = arith.constant 0 : index
    %c0_4 = arith.constant 0 : index
    %3 = vector.load %arg2[%c0_3, %c0_4] : memref<64x1xf32, #tpu.memory_space<vmem>>, vector<64x1xf32>
    %4 = vector.broadcast %3 : vector<64x1xf32> to vector<64x128xf32>
    %5 = arith.addf %2, %4 : vector<64x128xf32>
    %cst_5 = arith.constant 2.000000e-01 : f32
    %6 = vector.broadcast %cst_5 : f32 to vector<64x128xf32>
    %7 = arith.mulf %6, %5 : vector<64x128xf32>
    %8 = arith.maximumf %5, %7 : vector<64x128xf32>
    %c0_6 = arith.constant 0 : index
    %c0_7 = arith.constant 0 : index
    %9 = vector.load %arg3[%c0_6, %c0_7] : memref<16x64xf32, #tpu.memory_space<vmem>>, vector<16x64xf32>
    %cst_8 = arith.constant dense<0.000000e+00> : vector<16x128xf32>
    %10 = tpu.matmul %9, %8, %cst_8 {dimension_numbers = #tpu.dot_dimension_numbers<[1], [0], [0], [1], [0, 0, 1, 1], [], []>} : vector<16x64xf32>, vector<64x128xf32>, vector<16x128xf32> -> vector<16x128xf32>
    %c0_9 = arith.constant 0 : index
    %c0_10 = arith.constant 0 : index
    %11 = vector.load %arg4[%c0_9, %c0_10] : memref<16x1xf32, #tpu.memory_space<vmem>>, vector<16x1xf32>
    %12 = vector.broadcast %11 : vector<16x1xf32> to vector<16x128xf32>
    %13 = arith.addf %10, %12 : vector<16x128xf32>
    %cst_11 = arith.constant 2.000000e-01 : f32
    %14 = vector.broadcast %cst_11 : f32 to vector<16x128xf32>
    %15 = arith.mulf %14, %13 : vector<16x128xf32>
    %16 = arith.maximumf %13, %15 : vector<16x128xf32>
    %c0_12 = arith.constant 0 : index
    %c0_13 = arith.constant 0 : index
    %17 = vector.load %arg5[%c0_12, %c0_13] : memref<8x16xf32, #tpu.memory_space<vmem>>, vector<8x16xf32>
    %cst_14 = arith.constant dense<0.000000e+00> : vector<8x128xf32>
    %18 = tpu.matmul %17, %16, %cst_14 {dimension_numbers = #tpu.dot_dimension_numbers<[1], [0], [0], [1], [0, 0, 1, 1], [], []>} : vector<8x16xf32>, vector<16x128xf32>, vector<8x128xf32> -> vector<8x128xf32>
    %c0_15 = arith.constant 0 : index
    %c0_16 = arith.constant 0 : index
    %19 = vector.load %arg6[%c0_15, %c0_16] : memref<8x1xf32, #tpu.memory_space<vmem>>, vector<8x1xf32>
    %20 = vector.broadcast %19 : vector<8x1xf32> to vector<8x128xf32>
    %21 = arith.addf %18, %20 : vector<8x128xf32>
    %c0_17 = arith.constant 0 : index
    %c0_18 = arith.constant 0 : index
    %22 = vector.load %arg7[%c0_17, %c0_18] : memref<8x128xf32, #tpu.memory_space<vmem>>, vector<8x128xf32>
    tpu.vector_store %arg7[%c0_17, %c0_18], %21 {strides = array<i32>} : memref<8x128xf32, #tpu.memory_space<vmem>>, vector<8x128xf32>,
    return
  }
}

</mosaic_0001>

<llo_original>
// kernel: tpu_custom_call.1
$region0: #{tpu_custom_call.1}
  #allocation0 [shape = 'u32[]', space=smem, size = 0x4, offset = 0x4, fixed_abs, tag = 'smem constant byte address 0x4 - core index']
  #allocation1 [shape = 'u32[144,128]{1,0:T(1,128)}', space=vmem, size = 0x12000, scoped, tag = 'internal scratch']
  %s0 = inlined_call_operand.vmem [shape: f32[32,128], index: 0, kind: input, shape index: {}]
  %s1 = inlined_call_operand.vmem [shape: f32[64,32], index: 1, kind: input, shape index: {}]
  %s2 = inlined_call_operand.vmem [shape: f32[64,1], index: 2, kind: input, shape index: {}]
  %s3 = inlined_call_operand.vmem [shape: f32[16,64], index: 3, kind: input, shape index: {}]
  %s4 = inlined_call_operand.vmem [shape: f32[16,1], index: 4, kind: input, shape index: {}]
  %s5 = inlined_call_operand.vmem [shape: f32[8,16], index: 5, kind: input, shape index: {}]
  %s6 = inlined_call_operand.vmem [shape: f32[8,1], index: 6, kind: input, shape index: {}]
  %s7 = inlined_call_operand.hbm [shape: f32[8,128], index: 7, kind: output, shape index: {}]
  %s8 = sld [smem:[#allocation0]]
  $region38: #{tpu_custom_call.1} parent=0
    _
  %s10 = ssub.s32 1, %s8
  %s11 = scalar_select 0, %s10, %s8
  $region1: #{tpu_custom_call.1} parent=0
    #allocation2 [shape = 'u8[4096]{0}', space=vmem, size = 0x1000, scoped, tag = 'output window, operand 0, single buffered']
    #allocation3 [shape = 's32[1]{0}', space=sflag, size = 0x4, scoped, tag = 'scoped memory for tpu_custom_call.1']
    %12 = vsyncpa [#allocation3], 0
    // Predicated region
    $region2: #{tpu_custom_call.1} parent=1 // pred_check
      _
    $region3: #{tpu_custom_call.1} parent=1 // pred_check_branch
      %14 = sbr.rel (0) target = $region5
    $region4: #{tpu_custom_call.1} parent=1 // pred_region
      _
    $region5: #{tpu_custom_call.1} parent=1 // pred_fallthru
      _
    // Predicated region
    $region6: #{tpu_custom_call.1} parent=1 // pred_check
      _
    $region7: #{tpu_custom_call.1} parent=1 // pred_check_branch
      %16 = sbr.rel (0) target = $region9
    $region8: #{tpu_custom_call.1} parent=1 // pred_region
      _
    $region9: #{tpu_custom_call.1} parent=1 // pred_fallthru
      _
    // Predicated region
    $region10: #{tpu_custom_call.1} parent=1 // pred_check
      _
    $region11: #{tpu_custom_call.1} parent=1 // pred_check_branch
      %18 = sbr.rel (0) target = $region13
    $region12: #{tpu_custom_call.1} parent=1 // pred_region
      _
    $region13: #{tpu_custom_call.1} parent=1 // pred_fallthru
      _
    // Predicated region
    $region14: #{tpu_custom_call.1} parent=1 // pred_check
      _
    $region15: #{tpu_custom_call.1} parent=1 // pred_check_branch
      %20 = sbr.rel (0) target = $region17
    $region16: #{tpu_custom_call.1} parent=1 // pred_region
      _
    $region17: #{tpu_custom_call.1} parent=1 // pred_fallthru
      _
    // Predicated region
    $region18: #{tpu_custom_call.1} parent=1 // pred_check
      _
    $region19: #{tpu_custom_call.1} parent=1 // pred_check_branch
      %22 = sbr.rel (0) target = $region21
    $region20: #{tpu_custom_call.1} parent=1 // pred_region
      _
    $region21: #{tpu_custom_call.1} parent=1 // pred_fallthru
      _
    // Predicated region
    $region22: #{tpu_custom_call.1} parent=1 // pred_check
      _
    $region23: #{tpu_custom_call.1} parent=1 // pred_check_branch
      %24 = sbr.rel (0) target = $region25
    $region24: #{tpu_custom_call.1} parent=1 // pred_region
      _
    $region25: #{tpu_custom_call.1} parent=1 // pred_fallthru
      _
    // Predicated region
    $region26: #{tpu_custom_call.1} parent=1 // pred_check
      _
    $region27: #{tpu_custom_call.1} parent=1 // pred_check_branch
      %26 = sbr.rel (0) target = $region29
    $region28: #{tpu_custom_call.1} parent=1 // pred_region
      _
    $region29: #{tpu_custom_call.1} parent=1 // pred_fallthru
      _
    %v27 = vld [vmem:[%s1] sm:$0xff]
    %v28 = vld [vmem:[%s1 + $0x8] sm:$0xff]
    %v29 = vld [vmem:[%s1 + $0x10] sm:$0xff]
    %v30 = vld [vmem:[%s1 + $0x18] sm:$0xff]
    %v31 = vld [vmem:[%s1 + $0x20] sm:$0xff]
    %v32 = vld [vmem:[%s1 + $0x28] sm:$0xff]
    %v33 = vld [vmem:[%s1 + $0x30] sm:$0xff]
    %v34 = vld [vmem:[%s1 + $0x38] sm:$0xff]
    %v35 = vld [vmem:[%s0] sm:$0xff]
    %v36 = vld [vmem:[%s0 + $0x8] sm:$0xff]
    %v37 = vld [vmem:[%s0 + $0x10] sm:$0xff]
    %v38 = vld [vmem:[%s0 + $0x18] sm:$0xff]
    %v39 = vld [vmem:[%s2] sm:$0xff]
    %v40 = vld [vmem:[%s2 + $0x8] sm:$0xff]
    %v41 = vld [vmem:[%s2 + $0x10] sm:$0xff]
    %v42 = vld [vmem:[%s2 + $0x18] sm:$0xff]
    %v43 = vld [vmem:[%s2 + $0x20] sm:$0xff]
    %v44 = vld [vmem:[%s2 + $0x28] sm:$0xff]
    %v45 = vld [vmem:[%s2 + $0x30] sm:$0xff]
    %v46 = vld [vmem:[%s2 + $0x38] sm:$0xff]
    %48 = vset.pattern.permute.xlu0 0
    %49 = vperm.xlu0 %48, %v39
    %v50 = vpop.permute.xlu0 %49
    %53 = vset.pattern.permute.xlu0 0
    %54 = vperm.xlu0 %53, %v40
    %v55 = vpop.permute.xlu0 %54
    %58 = vset.pattern.permute.xlu0 0
    %59 = vperm.xlu0 %58, %v41
    %v60 = vpop.permute.xlu0 %59
    %63 = vset.pattern.permute.xlu0 0
    %64 = vperm.xlu0 %63, %v42
    %v65 = vpop.permute.xlu0 %64
    %68 = vset.pattern.permute.xlu0 0
    %69 = vperm.xlu0 %68, %v43
    %v70 = vpop.permute.xlu0 %69
    %73 = vset.pattern.permute.xlu0 0
    %74 = vperm.xlu0 %73, %v44
    %v75 = vpop.permute.xlu0 %74
    %78 = vset.pattern.permute.xlu0 0
    %79 = vperm.xlu0 %78, %v45
    %v80 = vpop.permute.xlu0 %79
    %83 = vset.pattern.permute.xlu0 0
    %84 = vperm.xlu0 %83, %v46
    %v85 = vpop.permute.xlu0 %84
    %vm87 = vcmask 261120
    %v89 = vsel %vm87, %v27, 0
    %v92 = vsel %vm87, %v28, 0
    %v95 = vsel %vm87, %v29, 0
    %v98 = vsel %vm87, %v30, 0
    %v101 = vsel %vm87, %v31, 0
    %v104 = vsel %vm87, %v32, 0
    %v107 = vsel %vm87, %v33, 0
    %v110 = vsel %vm87, %v34, 0
    %112 = vmatprep.subr.mxu0 0.0
    %113 = vmatpush1.msra.mxu0 %v35
    %114 = vmatprep.subr.mxu0 0.0
    %115 = vmatpush1.msra.mxu0 %v36
    %116 = vmatprep.subr.mxu0 0.0
    %117 = vmatpush1.msra.mxu0 %v37
    %118 = vmatprep.subr.mxu0 0.0
    %119 = vmatpush1.msra.mxu0 %v38
    %120 = vmatprep.subr.mxu0 0.0
    %121 = vmatpush1.msra.mxu0 0.0
    %122 = vmatprep.subr.mxu0 0.0
    %123 = vmatpush1.msra.mxu0 0.0
    %124 = vmatprep.subr.mxu0 0.0
    %125 = vmatpush1.msra.mxu0 0.0
    %126 = vmatprep.subr.mxu0 0.0
    %127 = vmatpush1.msra.mxu0 0.0
    %128 = vmatprep.subr.mxu0 0.0
    %129 = vmatpush1.msra.mxu0 0.0
    %130 = vmatprep.subr.mxu0 0.0
    %131 = vmatpush1.msra.mxu0 0.0
    %132 = vmatprep.subr.mxu0 0.0
    %133 = vmatpush1.msra.mxu0 0.0
    %134 = vmatprep.subr.mxu0 0.0
    %135 = vmatpush1.msra.mxu0 0.0
    %136 = vmatprep.subr.mxu0 0.0
    %137 = vmatpush1.msra.mxu0 0.0
    %138 = vmatprep.subr.mxu0 0.0
    %139 = vmatpush1.msra.mxu0 0.0
    %140 = vmatprep.subr.mxu0 0.0
    %141 = vmatpush1.msra.mxu0 0.0
    %142 = vmatprep.subr.mxu0 0.0
    %143 = vmatpush1.msra.mxu0 0.0
    %144 = vmatprep.subr.mxu0 0.0
    %145 = vmatpush1.msra.mxu0 0.0
    %146 = vmatprep.subr.mxu0 0.0
    %147 = vmatpush1.msra.mxu0 0.0
    %148 = vmatprep.subr.mxu0 0.0
    %149 = vmatpush1.msra.mxu0 0.0
    %150 = vmatprep.subr.mxu0 0.0
    %151 = vmatpush1.msra.mxu0 0.0
    %152 = vmatprep.subr.mxu0 0.0
    %153 = vmatpush1.msra.mxu0 0.0
    %154 = vmatprep.subr.mxu0 0.0
    %155 = vmatpush1.msra.mxu0 0.0
    %156 = vmatprep.subr.mxu0 0.0
    %157 = vmatpush1.msra.mxu0 0.0
    %158 = vmatprep.subr.mxu0 0.0
    %159 = vmatpush1.msra.mxu0 0.0
    %160 = vmatprep.subr.mxu0 0.0
    %161 = vmatpush1.msra.mxu0 0.0
    %162 = vmatprep.subr.mxu0 0.0
    %163 = vmatpush1.msra.mxu0 0.0
    %164 = vmatprep.subr.mxu0 0.0
    %165 = vmatpush1.msra.mxu0 0.0
    %166 = vmatprep.subr.mxu0 0.0
    %167 = vmatpush1.msra.mxu0 0.0
    %168 = vmatprep.subr.mxu0 0.0
    %169 = vmatpush1.msra.mxu0 0.0
    %170 = vmatprep.subr.mxu0 0.0
    %171 = vmatpush1.msra.mxu0 0.0
    %172 = vmatprep.subr.mxu0 0.0
    %173 = vmatpush1.msra.mxu0 0.0
    %174 = vmatprep.subr.mxu0 0.0
    %175 = vmatpush1.msra.mxu0 0.0
    %176 = vmatprep.mubr.f32.mxu0 0.0
    %177 = vmatmul.mubr.f32.gmra.mrb[0].mxu0 %v89
    %v178 = vpop.f32.mrb[0].mxu0
    %v179 = vadd.f32 %v50, %v178
    %v180 = vpop.f32.mrb[0].mxu0
    %181 = vmatprep.mubr.f32.mxu0 0.0
    %182 = vmatmul.mubr.f32.gmra.mrb[0].mxu0 %v92
    %v183 = vpop.f32.mrb[0].mxu0
    %v184 = vadd.f32 %v55, %v183
    %v185 = vpop.f32.mrb[0].mxu0
    %186 = vmatprep.mubr.f32.mxu0 0.0
    %187 = vmatmul.mubr.f32.gmra.mrb[0].mxu0 %v95
    %v188 = vpop.f32.mrb[0].mxu0
    %v189 = vadd.f32 %v60, %v188
    %v190 = vpop.f32.mrb[0].mxu0
    %191 = vmatprep.mubr.f32.mxu0 0.0
    %192 = vmatmul.mubr.f32.gmra.mrb[0].mxu0 %v98
    %v193 = vpop.f32.mrb[0].mxu0
    %v194 = vadd.f32 %v65, %v193
    %v195 = vpop.f32.mrb[0].mxu0
    %196 = vmatprep.mubr.f32.mxu0 0.0
    %197 = vmatmul.mubr.f32.gmra.mrb[0].mxu0 %v101
    %v198 = vpop.f32.mrb[0].mxu0
    %v199 = vadd.f32 %v70, %v198
    %v200 = vpop.f32.mrb[0].mxu0
    %201 = vmatprep.mubr.f32.mxu0 0.0
    %202 = vmatmul.mubr.f32.gmra.mrb[0].mxu0 %v104
    %v203 = vpop.f32.mrb[0].mxu0
    %v204 = vadd.f32 %v75, %v203
    %v205 = vpop.f32.mrb[0].mxu0
    %206 = vmatprep.mubr.f32.mxu0 0.0
    %207 = vmatmul.mubr.f32.gmra.mrb[0].mxu0 %v107
    %v208 = vpop.f32.mrb[0].mxu0
    %v209 = vadd.f32 %v80, %v208
    %v210 = vpop.f32.mrb[0].mxu0
    %211 = vmatprep.mubr.f32.mxu0 0.0
    %212 = vmatmul.mubr.f32.gmra.mrb[0].mxu0 %v110
    %v213 = vpop.f32.mrb[0].mxu0
    %v214 = vadd.f32 %v85, %v213
    %v215 = vpop.f32.mrb[0].mxu0
    %216 = vdwg.mxu0
    %v217 = vmul.f32 %v179, 0.2
    %v218 = vmul.f32 %v184, 0.2
    %v219 = vmul.f32 %v189, 0.2
    %v220 = vmul.f32 %v194, 0.2
    %v221 = vmul.f32 %v199, 0.2
    %v222 = vmul.f32 %v204, 0.2
    %v223 = vmul.f32 %v209, 0.2
    %v224 = vmul.f32 %v214, 0.2
    %v225 = vmax.f32 %v179, %v217
    %v226 = vmax.f32 %v184, %v218
    %v227 = vmax.f32 %v189, %v219
    %v228 = vmax.f32 %v194, %v220
    %v229 = vmax.f32 %v199, %v221
    %v230 = vmax.f32 %v204, %v222
    %v231 = vmax.f32 %v209, %v223
    %v232 = vmax.f32 %v214, %v224
    %v233 = vld [vmem:[%s3] sm:$0xff]
    %v234 = vld [vmem:[%s3 + $0x8] sm:$0xff]
    %v235 = vld [vmem:[%s4] sm:$0xff]
    %v236 = vld [vmem:[%s4 + $0x8] sm:$0xff]
    %238 = vset.pattern.permute.xlu0 0
    %239 = vperm.xlu0 %238, %v235
    %v240 = vpop.permute.xlu0 %239
    %243 = vset.pattern.permute.xlu0 0
    %244 = vperm.xlu0 %243, %v236
    %v245 = vpop.permute.xlu0 %244
    %vm247 = vcmask 523264
    %v249 = vsel %vm247, %v233, 0
    %v252 = vsel %vm247, %v234, 0
    %254 = vmatprep.subr.mxu0 0.0
    %255 = vmatpush1.msra.mxu0 %v225
    %256 = vmatprep.subr.mxu0 0.0
    %257 = vmatpush1.msra.mxu0 %v226
    %258 = vmatprep.subr.mxu0 0.0
    %259 = vmatpush1.msra.mxu0 %v227
    %260 = vmatprep.subr.mxu0 0.0
    %261 = vmatpush1.msra.mxu0 %v228
    %262 = vmatprep.subr.mxu0 0.0
    %263 = vmatpush1.msra.mxu0 %v229
    %264 = vmatprep.subr.mxu0 0.0
    %265 = vmatpush1.msra.mxu0 %v230
    %266 = vmatprep.subr.mxu0 0.0
    %267 = vmatpush1.msra.mxu0 %v231
    %268 = vmatprep.subr.mxu0 0.0
    %269 = vmatpush1.msra.mxu0 %v232
    %270 = vmatprep.subr.mxu0 0.0
    %271 = vmatpush1.msra.mxu0 0.0
    %272 = vmatprep.subr.mxu0 0.0
    %273 = vmatpush1.msra.mxu0 0.0
    %274 = vmatprep.subr.mxu0 0.0
    %275 = vmatpush1.msra.mxu0 0.0
    %276 = vmatprep.subr.mxu0 0.0
    %277 = vmatpush1.msra.mxu0 0.0
    %278 = vmatprep.subr.mxu0 0.0
    %279 = vmatpush1.msra.mxu0 0.0
    %280 = vmatprep.subr.mxu0 0.0
    %281 = vmatpush1.msra.mxu0 0.0
    %282 = vmatprep.subr.mxu0 0.0
    %283 = vmatpush1.msra.mxu0 0.0
    %284 = vmatprep.subr.mxu0 0.0
    %285 = vmatpush1.msra.mxu0 0.0
    %286 = vmatprep.subr.mxu0 0.0
    %287 = vmatpush1.msra.mxu0 0.0
    %288 = vmatprep.subr.mxu0 0.0
    %289 = vmatpush1.msra.mxu0 0.0
    %290 = vmatprep.subr.mxu0 0.0
    %291 = vmatpush1.msra.mxu0 0.0
    %292 = vmatprep.subr.mxu0 0.0
    %293 = vmatpush1.msra.mxu0 0.0
    %294 = vmatprep.subr.mxu0 0.0
    %295 = vmatpush1.msra.mxu0 0.0
    %296 = vmatprep.subr.mxu0 0.0
    %297 = vmatpush1.msra.mxu0 0.0
    %298 = vmatprep.subr.mxu0 0.0
    %299 = vmatpush1.msra.mxu0 0.0
    %300 = vmatprep.subr.mxu0 0.0
    %301 = vmatpush1.msra.mxu0 0.0
    %302 = vmatprep.subr.mxu0 0.0
    %303 = vmatpush1.msra.mxu0 0.0
    %304 = vmatprep.subr.mxu0 0.0
    %305 = vmatpush1.msra.mxu0 0.0
    %306 = vmatprep.subr.mxu0 0.0
    %307 = vmatpush1.msra.mxu0 0.0
    %308 = vmatprep.subr.mxu0 0.0
    %309 = vmatpush1.msra.mxu0 0.0
    %310 = vmatprep.subr.mxu0 0.0
    %311 = vmatpush1.msra.mxu0 0.0
    %312 = vmatprep.subr.mxu0 0.0
    %313 = vmatpush1.msra.mxu0 0.0
    %314 = vmatprep.subr.mxu0 0.0
    %315 = vmatpush1.msra.mxu0 0.0
    %316 = vmatprep.subr.mxu0 0.0
    %317 = vmatpush1.msra.mxu0 0.0
    %318 = vmatprep.mubr.f32.mxu0 0.0
    %319 = vmatmul.mubr.f32.gmra.mrb[0].mxu0 %v249
    %v320 = vpop.f32.mrb[0].mxu0
    %v321 = vadd.f32 %v240, %v320
    %v322 = vpop.f32.mrb[0].mxu0
    %323 = vmatprep.mubr.f32.mxu0 0.0
    %324 = vmatmul.mubr.f32.gmra.mrb[0].mxu0 %v252
    %v325 = vpop.f32.mrb[0].mxu0
    %v326 = vadd.f32 %v245, %v325
    %v327 = vpop.f32.mrb[0].mxu0
    %328 = vdwg.mxu0
    %v329 = vmul.f32 %v321, 0.2
    %v330 = vmul.f32 %v326, 0.2
    %v331 = vmax.f32 %v321, %v329
    %v332 = vmax.f32 %v326, %v330
    %v333 = vld [vmem:[%s5] sm:$0xff]
    %v334 = vld [vmem:[%s6] sm:$0xff]
    %336 = vset.pattern.permute.xlu0 0
    %337 = vperm.xlu0 %336, %v334
    %v338 = vpop.permute.xlu0 %337
    %vm340 = vcmask 130048
    %v342 = vsel %vm340, %v333, 0
    %344 = vmatprep.subr.mxu0 0.0
    %345 = vmatpush1.msra.mxu0 %v331
    %346 = vmatprep.subr.mxu0 0.0
    %347 = vmatpush1.msra.mxu0 %v332
    %348 = vmatprep.subr.mxu0 0.0
    %349 = vmatpush1.msra.mxu0 0.0
    %350 = vmatprep.subr.mxu0 0.0
    %351 = vmatpush1.msra.mxu0 0.0
    %352 = vmatprep.subr.mxu0 0.0
    %353 = vmatpush1.msra.mxu0 0.0
    %354 = vmatprep.subr.mxu0 0.0
    %355 = vmatpush1.msra.mxu0 0.0
    %356 = vmatprep.subr.mxu0 0.0
    %357 = vmatpush1.msra.mxu0 0.0
    %358 = vmatprep.subr.mxu0 0.0
    %359 = vmatpush1.msra.mxu0 0.0
    %360 = vmatprep.subr.mxu0 0.0
    %361 = vmatpush1.msra.mxu0 0.0
    %362 = vmatprep.subr.mxu0 0.0
    %363 = vmatpush1.msra.mxu0 0.0
    %364 = vmatprep.subr.mxu0 0.0
    %365 = vmatpush1.msra.mxu0 0.0
    %366 = vmatprep.subr.mxu0 0.0
    %367 = vmatpush1.msra.mxu0 0.0
    %368 = vmatprep.subr.mxu0 0.0
    %369 = vmatpush1.msra.mxu0 0.0
    %370 = vmatprep.subr.mxu0 0.0
    %371 = vmatpush1.msra.mxu0 0.0
    %372 = vmatprep.subr.mxu0 0.0
    %373 = vmatpush1.msra.mxu0 0.0
    %374 = vmatprep.subr.mxu0 0.0
    %375 = vmatpush1.msra.mxu0 0.0
    %376 = vmatprep.subr.mxu0 0.0
    %377 = vmatpush1.msra.mxu0 0.0
    %378 = vmatprep.subr.mxu0 0.0
    %379 = vmatpush1.msra.mxu0 0.0
    %380 = vmatprep.subr.mxu0 0.0
    %381 = vmatpush1.msra.mxu0 0.0
    %382 = vmatprep.subr.mxu0 0.0
    %383 = vmatpush1.msra.mxu0 0.0
    %384 = vmatprep.subr.mxu0 0.0
    %385 = vmatpush1.msra.mxu0 0.0
    %386 = vmatprep.subr.mxu0 0.0
    %387 = vmatpush1.msra.mxu0 0.0
    %388 = vmatprep.subr.mxu0 0.0
    %389 = vmatpush1.msra.mxu0 0.0
    %390 = vmatprep.subr.mxu0 0.0
    %391 = vmatpush1.msra.mxu0 0.0
    %392 = vmatprep.subr.mxu0 0.0
    %393 = vmatpush1.msra.mxu0 0.0
    %394 = vmatprep.subr.mxu0 0.0
    %395 = vmatpush1.msra.mxu0 0.0
    %396 = vmatprep.subr.mxu0 0.0
    %397 = vmatpush1.msra.mxu0 0.0
    %398 = vmatprep.subr.mxu0 0.0
    %399 = vmatpush1.msra.mxu0 0.0
    %400 = vmatprep.subr.mxu0 0.0
    %401 = vmatpush1.msra.mxu0 0.0
    %402 = vmatprep.subr.mxu0 0.0
    %403 = vmatpush1.msra.mxu0 0.0
    %404 = vmatprep.subr.mxu0 0.0
    %405 = vmatpush1.msra.mxu0 0.0
    %406 = vmatprep.subr.mxu0 0.0
    %407 = vmatpush1.msra.mxu0 0.0
    %408 = vmatprep.mubr.f32.mxu0 0.0
    %409 = vmatmul.mubr.f32.gmra.mrb[0].mxu0 %v342
    %v410 = vpop.f32.mrb[0].mxu0
    %v411 = vadd.f32 %v338, %v410
    %v412 = vpop.f32.mrb[0].mxu0
    %413 = vdwg.mxu0
    %414 = vst [vmem:[#allocation2] sm:$0xff] %v411
    // Predicated region
    $region30: #{tpu_custom_call.1} parent=1 // pred_check
      _
    $region31: #{tpu_custom_call.1} parent=1 // pred_check_branch
      %416 = sbr.rel (0) target = $region33
    $region32: #{tpu_custom_call.1} parent=1 // pred_region
      %s418 = ssub.s32 128, 128
      %419 = vsyncadd [#allocation3], %s418
      %s421 = sshll.u32 [#allocation2], 4
      %s422 = int_to_ptr.vmem [resolvable:$true] %s421
      %424 = dma.vmem_to_hbm [thread:$0]  %s422, 128, %s7, [#allocation3]
    $region33: #{tpu_custom_call.1} parent=1 // pred_fallthru
      _
    // Predicated region
    $region34: #{tpu_custom_call.1} parent=1 // pred_check
      _
    $region35: #{tpu_custom_call.1} parent=1 // pred_check_branch
      %426 = sbr.rel (0) target = $region37
    $region36: #{tpu_custom_call.1} parent=1 // pred_region
      %427 = dma.done [#allocation3], 128
    $region37: #{tpu_custom_call.1} parent=1 // pred_fallthru
      _
    %428 = vsyncpa [#allocation3], 1

</llo_original>
